<compile_context>
chip_gen: v7x
topology: tpu7x:2x2x1
jax: 0.10.0
libtpu: 0.0.40
codegen_flags: <defaults>
</compile_context>

<pallas_src>
import math
import jax
import jax.numpy as jnp
from jax.experimental import pallas as pl
from jax.experimental.pallas import tpu as pltpu


def _round_up(n, m):
    return (n + m - 1) // m * m


def class_block_kernel(x_ref, w1_ref, w2_ref, b2_ref, out_ref):
    # Cast x to bf16 on the VPU (hidden under MXU work); Linear-1 on the MXU
    # with f32 accumulation.  BN affine + Linear-1 bias are folded into
    # w1 / b2 at parameter-prep time; relu=False and eval-mode Dropout = identity.
    xb = x_ref[...].astype(jnp.bfloat16)
    h = jnp.dot(xb, w1_ref[...], preferred_element_type=jnp.float32)
    # Classifier Linear (MXU) + bias; output lane dim is padded to a 256-multiple.
    y = jnp.dot(h.astype(jnp.bfloat16), w2_ref[...],
                preferred_element_type=jnp.float32)
    out_ref[...] = (y + b2_ref[...]).astype(out_ref.dtype)


def class_block_forward(x, params, *, out_dtype=jnp.float32):
    """x: (B, input_dim) float32. params: dict from make_params. Returns (B, class_num)."""
    B, D = x.shape
    Hp = params["w1"].shape[1]          # padded bottleneck dim
    Cp = params["w2"].shape[1]          # lane/MXU-padded class dim
    C = params["class_num"]

    # ---- generation-aware VMEM budget -> derive TB from the real footprint ----
    try:
        vmem_cap = int(pltpu.get_tpu_info().vmem_capacity_bytes)
    except Exception:
        vmem_cap = 64 << 20             # conservative: v7x per-TC physical VMEM
    budget = vmem_cap * 3 // 4          # headroom for Mosaic internal scratch

    weight_bytes = (params["w1"].size * 2 + params["w2"].size * 2
                    + params["b2"].size * 4)
    # Budget conservatively for the fallback path where residents may still be
    # double-buffered.
    resident_bytes = 2 * weight_bytes
    out_bytes = jnp.dtype(out_dtype).itemsize

    def footprint(tb):
        x_tiles = 2 * tb * D * 4                 # double-buffered f32 x tile
        out_tiles = 2 * tb * Cp * out_bytes      # double-buffered out tile
        # intermediates (vregs / internal scratch): bf16 x copy, f32 h, bf16 h, f32 y
        interm = tb * D * 2 + tb * Hp * 6 + tb * Cp * 4
        return resident_bytes + x_tiles + out_tiles + interm

    # Largest multiple-of-16 batch tile (<= 2048) whose footprint fits the budget.
    tb = 2048
    while tb > 16 and footprint(tb) > budget:
        tb -= 16
    # v7x megacore: prefer >= 2 batch tiles so ("parallel",) can use both TCs.
    if B > 16:
        tb = min(tb, _round_up(pl.cdiv(B, 2), 16))
    TB = max(8, min(tb, _round_up(B, 8)))
    nb = pl.cdiv(B, TB)                 # ragged last tile handled by Pallas

    vmem_limit = int(min(max(footprint(TB) + (8 << 20), 32 << 20),
                         int(vmem_cap * 0.9)))

    cost = pl.CostEstimate(
        flops=2 * B * (D * Hp + Hp * Cp),
        transcendentals=0,
        bytes_accessed=x.size * 4 + weight_bytes + B * Cp * out_bytes,
    )

    def build_call(single_buffer_residents):
        if single_buffer_residents:
            def resident(shape):
                # Constant index_map + single buffer: stays resident in VMEM,
                # no wasted second buffer.
                return pl.BlockSpec(shape, lambda i: (0,) * len(shape),
                                    pipeline_mode=pl.Buffered(1))
        else:
            def resident(shape):
                return pl.BlockSpec(shape, lambda i: (0,) * len(shape))

        return pl.pallas_call(
            class_block_kernel,
            out_shape=jax.ShapeDtypeStruct((B, Cp), out_dtype),
            grid=(nb,),
            in_specs=[
                pl.BlockSpec((TB, D), lambda i: (i, 0)),   # x tile (pipelined)
                resident(params["w1"].shape),
                resident(params["w2"].shape),
                resident(params["b2"].shape),
            ],
            out_specs=pl.BlockSpec((TB, Cp), lambda i: (i, 0)),
            compiler_params=pltpu.CompilerParams(
                dimension_semantics=("parallel",),
                vmem_limit_bytes=vmem_limit,
            ),
            cost_estimate=cost,
        )

    args = (x, params["w1"], params["w2"], params["b2"])
    try:
        out = build_call(True)(*args)
    except Exception:
        # Fallback if this JAX version rejects single-buffered (Buffered(1)) inputs.
        out = build_call(False)(*args)

    return out[:, :C]


def make_params(key, input_dim, class_num, num_bottleneck, *, mxu_pad=256):
    """Deterministic parameter init matching the PyTorch module's __init__ (eval mode).

    BN affine (running stats) and the Linear-1 bias are folded into w1 / b2;
    H and class_num are zero-padded to MXU-native multiples of `mxu_pad`.
    """
    k1, k2 = jax.random.split(key, 2)

    # add_block Linear: kaiming_normal_(a=0, mode='fan_out') -> std = sqrt(2/out_features)
    std1 = math.sqrt(2.0 / num_bottleneck)
    w1 = jax.random.normal(k1, (input_dim, num_bottleneck), jnp.float32) * std1
    b1 = jnp.zeros((num_bottleneck,), jnp.float32)

    # BatchNorm1d defaults: gamma=1, beta=0, running_mean=0, running_var=1, eps=1e-5
    eps = 1e-5
    gamma = jnp.ones((num_bottleneck,), jnp.float32)
    beta = jnp.zeros((num_bottleneck,), jnp.float32)
    running_mean = jnp.zeros((num_bottleneck,), jnp.float32)
    running_var = jnp.ones((num_bottleneck,), jnp.float32)
    scale = gamma / jnp.sqrt(running_var + eps)
    shift = (b1 - running_mean) * scale + beta

    # classifier Linear: normal_(std=0.001), bias=0
    w2 = jax.random.normal(k2, (num_bottleneck, class_num), jnp.float32) * 0.001
    b2 = jnp.zeros((class_num,), jnp.float32)

    # Fold BN into the weights (f32, before bf16 cast):
    #   y = ((x@w1 + b1 - mean)*scale + beta) @ w2 + b2
    #     = x @ (w1*scale) @ w2 + (shift @ w2 + b2)
    w1f = w1 * scale[None, :]
    b2f = shift @ w2 + b2

    # Pad to MXU-native widths (zeros; resident weights, DMA'd once).
    Hp = _round_up(num_bottleneck, mxu_pad)
    Cp = _round_up(class_num, mxu_pad)
    w1p = jnp.zeros((input_dim, Hp), jnp.float32).at[:, :num_bottleneck].set(w1f)
    w2p = jnp.zeros((Hp, Cp), jnp.float32).at[:num_bottleneck, :class_num].set(w2)
    b2p = jnp.zeros((1, Cp), jnp.float32).at[0, :class_num].set(b2f)

    return dict(
        w1=w1p.astype(jnp.bfloat16),    # (D, Hp)  bf16, BN-folded
        w2=w2p.astype(jnp.bfloat16),    # (Hp, Cp) bf16
        b2=b2p,                         # (1, Cp)  f32, bias + folded BN shift
        class_num=class_num,
    )


def reference_forward(x, params):
    """Pure-JAX reference mirroring the kernel's bf16-in / f32-accumulate math."""
    h = jnp.dot(x.astype(jnp.bfloat16), params["w1"],
                preferred_element_type=jnp.float32)
    y = jnp.dot(h.astype(jnp.bfloat16), params["w2"],
                preferred_element_type=jnp.float32)
    y = y + params["b2"]
    return y[:, :params["class_num"]]


if __name__ == "__main__":
    B, INPUT_DIM, NUM_BOTTLENECK, CLASS_NUM = 8, 64, 128, 16

    key = jax.random.PRNGKey(0)
    kx, kp = jax.random.split(key)
    x = jax.random.normal(kx, (B, INPUT_DIM), jnp.float32)
    params = make_params(kp, INPUT_DIM, CLASS_NUM, NUM_BOTTLENECK)

    out = class_block_forward(x, params)
    out = jax.block_until_ready(out)

    ref = reference_forward(x, params)
    assert out.shape == (B, CLASS_NUM), out.shape
    assert jnp.allclose(out, ref, atol=1e-4, rtol=1e-3), "mismatch vs reference"
    print("KERNEL_OK")
</pallas_src>

<mosaic_0001>
module attributes {stable_mosaic.version = 11 : i64} {
  func.func @class_block_kernel(%arg0: i32, %arg1: memref<8x64xf32, #tpu.memory_space<vmem>>, %arg2: memref<64x256xbf16, #tpu.memory_space<vmem>>, %arg3: memref<256x256xbf16, #tpu.memory_space<vmem>>, %arg4: memref<1x256xf32, #tpu.memory_space<vmem>>, %arg5: memref<8x256xf32, #tpu.memory_space<vmem>>) attributes {dimension_semantics = [#tpu.dimension_semantics<parallel>], iteration_bounds = array<i64: 1>, scalar_prefetch = 0 : i64, scratch_operands = 0 : i64, tpu.core_type = #tpu.core_type<tc>, window_params = [{transform_indices = @transform_0, window_bounds = array<i64: 8, 64>}, {pipeline_mode = #tpu.pipeline_mode<synchronous>, transform_indices = @transform_1, window_bounds = array<i64: 64, 256>}, {pipeline_mode = #tpu.pipeline_mode<synchronous>, transform_indices = @transform_2, window_bounds = array<i64: 256, 256>}, {pipeline_mode = #tpu.pipeline_mode<synchronous>, transform_indices = @transform_3, window_bounds = array<i64: 1, 256>}, {transform_indices = @transform_4, window_bounds = array<i64: 8, 256>}]} {
    %c0 = arith.constant 0 : index
    %c0_0 = arith.constant 0 : index
    %0 = vector.load %arg1[%c0, %c0_0] : memref<8x64xf32, #tpu.memory_space<vmem>>, vector<8x64xf32>
    %1 = arith.truncf %0 : vector<8x64xf32> to vector<8x64xbf16>
    %c0_1 = arith.constant 0 : index
    %c0_2 = arith.constant 0 : index
    %2 = vector.load %arg2[%c0_1, %c0_2] : memref<64x256xbf16, #tpu.memory_space<vmem>>, vector<64x256xbf16>
    %cst = arith.constant dense<0.000000e+00> : vector<8x256xf32>
    %3 = tpu.matmul %1, %2, %cst {dimension_numbers = #tpu.dot_dimension_numbers<[1], [0], [0], [1], [0, 0, 1, 1], [], []>} : vector<8x64xbf16>, vector<64x256xbf16>, vector<8x256xf32> -> vector<8x256xf32>
    %4 = arith.truncf %3 : vector<8x256xf32> to vector<8x256xbf16>
    %c0_3 = arith.constant 0 : index
    %c0_4 = arith.constant 0 : index
    %5 = vector.load %arg3[%c0_3, %c0_4] : memref<256x256xbf16, #tpu.memory_space<vmem>>, vector<256x256xbf16>
    %cst_5 = arith.constant dense<0.000000e+00> : vector<8x256xf32>
    %6 = tpu.matmul %4, %5, %cst_5 {dimension_numbers = #tpu.dot_dimension_numbers<[1], [0], [0], [1], [0, 0, 1, 1], [], []>} : vector<8x256xbf16>, vector<256x256xbf16>, vector<8x256xf32> -> vector<8x256xf32>
    %c0_6 = arith.constant 0 : index
    %c0_7 = arith.constant 0 : index
    %7 = vector.load %arg4[%c0_6, %c0_7] : memref<1x256xf32, #tpu.memory_space<vmem>>, vector<1x256xf32>
    %8 = vector.broadcast %7 : vector<1x256xf32> to vector<8x256xf32>
    %9 = arith.addf %6, %8 : vector<8x256xf32>
    %c0_8 = arith.constant 0 : index
    %c0_9 = arith.constant 0 : index
    %10 = vector.load %arg5[%c0_8, %c0_9] : memref<8x256xf32, #tpu.memory_space<vmem>>, vector<8x256xf32>
    tpu.vector_store %arg5[%c0_8, %c0_9], %9 {strides = array<i32>} : memref<8x256xf32, #tpu.memory_space<vmem>>, vector<8x256xf32>,
    return
  }
  func.func @transform_0(%arg0: i32) -> (i32, i32) {
    %c0_i32 = arith.constant 0 : i32
    %c0_i32_0 = arith.constant 0 : i32
    return %arg0, %c0_i32 : i32, i32
  }
  func.func @transform_1(%arg0: i32) -> (i32, i32) {
    %c0_i32 = arith.constant 0 : i32
    %c0_i32_0 = arith.constant 0 : i32
    %c0_i32_1 = arith.constant 0 : i32
    return %c0_i32, %c0_i32_0 : i32, i32
  }
  func.func @transform_2(%arg0: i32) -> (i32, i32) {
    %c0_i32 = arith.constant 0 : i32
    %c0_i32_0 = arith.constant 0 : i32
    %c0_i32_1 = arith.constant 0 : i32
    return %c0_i32, %c0_i32_0 : i32, i32
  }
  func.func @transform_3(%arg0: i32) -> (i32, i32) {
    %c0_i32 = arith.constant 0 : i32
    %c0_i32_0 = arith.constant 0 : i32
    %c0_i32_1 = arith.constant 0 : i32
    return %c0_i32, %c0_i32_0 : i32, i32
  }
  func.func @transform_4(%arg0: i32) -> (i32, i32) {
    %c0_i32 = arith.constant 0 : i32
    %c0_i32_0 = arith.constant 0 : i32
    return %arg0, %c0_i32 : i32, i32
  }
}

module attributes {stable_mosaic.version = 11 : i64} {
  func.func @class_block_kernel(%arg0: i32, %arg1: memref<8x64xf32, #tpu.memory_space<vmem>>, %arg2: memref<64x256xbf16, #tpu.memory_space<vmem>>, %arg3: memref<256x256xbf16, #tpu.memory_space<vmem>>, %arg4: memref<1x256xf32, #tpu.memory_space<vmem>>, %arg5: memref<8x256xf32, #tpu.memory_space<vmem>>) attributes {dimension_semantics = [#tpu.dimension_semantics<parallel>], iteration_bounds = array<i64: 1>, scalar_prefetch = 0 : i64, scratch_operands = 0 : i64, tpu.core_type = #tpu.core_type<tc>, window_params = [{transform_indices = @transform_0, window_bounds = array<i64: 8, 64>}, {pipeline_mode = #tpu.pipeline_mode<synchronous>, transform_indices = @transform_1, window_bounds = array<i64: 64, 256>}, {pipeline_mode = #tpu.pipeline_mode<synchronous>, transform_indices = @transform_2, window_bounds = array<i64: 256, 256>}, {pipeline_mode = #tpu.pipeline_mode<synchronous>, transform_indices = @transform_3, window_bounds = array<i64: 1, 256>}, {transform_indices = @transform_4, window_bounds = array<i64: 8, 256>}]} {
    %c0 = arith.constant 0 : index
    %c0_0 = arith.constant 0 : index
    %0 = vector.load %arg1[%c0, %c0_0] : memref<8x64xf32, #tpu.memory_space<vmem>>, vector<8x64xf32>
    %1 = arith.truncf %0 : vector<8x64xf32> to vector<8x64xbf16>
    %c0_1 = arith.constant 0 : index
    %c0_2 = arith.constant 0 : index
    %2 = vector.load %arg2[%c0_1, %c0_2] : memref<64x256xbf16, #tpu.memory_space<vmem>>, vector<64x256xbf16>
    %cst = arith.constant dense<0.000000e+00> : vector<8x256xf32>
    %3 = tpu.matmul %1, %2, %cst {dimension_numbers = #tpu.dot_dimension_numbers<[1], [0], [0], [1], [0, 0, 1, 1], [], []>} : vector<8x64xbf16>, vector<64x256xbf16>, vector<8x256xf32> -> vector<8x256xf32>
    %4 = arith.truncf %3 : vector<8x256xf32> to vector<8x256xbf16>
    %c0_3 = arith.constant 0 : index
    %c0_4 = arith.constant 0 : index
    %5 = vector.load %arg3[%c0_3, %c0_4] : memref<256x256xbf16, #tpu.memory_space<vmem>>, vector<256x256xbf16>
    %cst_5 = arith.constant dense<0.000000e+00> : vector<8x256xf32>
    %6 = tpu.matmul %4, %5, %cst_5 {dimension_numbers = #tpu.dot_dimension_numbers<[1], [0], [0], [1], [0, 0, 1, 1], [], []>} : vector<8x256xbf16>, vector<256x256xbf16>, vector<8x256xf32> -> vector<8x256xf32>
    %c0_6 = arith.constant 0 : index
    %c0_7 = arith.constant 0 : index
    %7 = vector.load %arg4[%c0_6, %c0_7] : memref<1x256xf32, #tpu.memory_space<vmem>>, vector<1x256xf32>
    %8 = vector.broadcast %7 : vector<1x256xf32> to vector<8x256xf32>
    %9 = arith.addf %6, %8 : vector<8x256xf32>
    %c0_8 = arith.constant 0 : index
    %c0_9 = arith.constant 0 : index
    %10 = vector.load %arg5[%c0_8, %c0_9] : memref<8x256xf32, #tpu.memory_space<vmem>>, vector<8x256xf32>
    tpu.vector_store %arg5[%c0_8, %c0_9], %9 {strides = array<i32>} : memref<8x256xf32, #tpu.memory_space<vmem>>, vector<8x256xf32>,
    return
  }
  func.func @transform_0(%arg0: i32) -> (i32, i32) {
    %c0_i32 = arith.constant 0 : i32
    %c0_i32_0 = arith.constant 0 : i32
    return %arg0, %c0_i32 : i32, i32
  }
  func.func @transform_1(%arg0: i32) -> (i32, i32) {
    %c0_i32 = arith.constant 0 : i32
    %c0_i32_0 = arith.constant 0 : i32
    %c0_i32_1 = arith.constant 0 : i32
    return %c0_i32, %c0_i32_0 : i32, i32
  }
  func.func @transform_2(%arg0: i32) -> (i32, i32) {
    %c0_i32 = arith.constant 0 : i32
    %c0_i32_0 = arith.constant 0 : i32
    %c0_i32_1 = arith.constant 0 : i32
    return %c0_i32, %c0_i32_0 : i32, i32
  }
  func.func @transform_3(%arg0: i32) -> (i32, i32) {
    %c0_i32 = arith.constant 0 : i32
    %c0_i32_0 = arith.constant 0 : i32
    %c0_i32_1 = arith.constant 0 : i32
    return %c0_i32, %c0_i32_0 : i32, i32
  }
  func.func @transform_4(%arg0: i32) -> (i32, i32) {
    %c0_i32 = arith.constant 0 : i32
    %c0_i32_0 = arith.constant 0 : i32
    return %arg0, %c0_i32 : i32, i32
  }
}

</mosaic_0001>

<llo_original>
// kernel: tpu_custom_call.1
$region0: #{tpu_custom_call.1}
  #allocation0 [shape = 'u32[]', space=smem, size = 0x4, offset = 0x4, fixed_abs, tag = 'smem constant byte address 0x4 - core index']
  #allocation1 [shape = 'u32[144,128]{1,0:T(1,128)}', space=vmem, size = 0x12000, scoped, tag = 'internal scratch']
  %s0 = inlined_call_operand.hbm [shape: f32[8,64], index: 0, kind: input, shape index: {}]
  %s1 = inlined_call_operand.hbm [shape: bf16[64,256], index: 1, kind: input, shape index: {}]
  %s2 = inlined_call_operand.hbm [shape: bf16[256,256], index: 2, kind: input, shape index: {}]
  %s3 = inlined_call_operand.vmem [shape: f32[1,256], index: 3, kind: input, shape index: {}]
  %s4 = inlined_call_operand.hbm [shape: f32[8,256], index: 4, kind: output, shape index: {}]
  %s5 = sld [smem:[#allocation0]]
  $region38: #{tpu_custom_call.1} parent=0
    _
  %s7 = ssub.s32 1, %s5
  %s8 = scalar_select 0, %s7, %s5
  $region1: #{tpu_custom_call.1} parent=0
    #allocation2 [shape = 'u8[4096]{0}', space=vmem, size = 0x1000, scoped, tag = 'input window, operand 0, single buffered']
    #allocation3 [shape = 's32[1]{0}', space=sflag, size = 0x4, scoped, tag = 'scoped memory for tpu_custom_call.1']
    #allocation4 [shape = 's32[1]{0}', space=sflag, size = 0x4, scoped, tag = 'scoped memory for tpu_custom_call.1']
    #allocation5 [shape = 'u8[32768]{0}', space=vmem, size = 0x8000, scoped, tag = 'input window, operand 1, single buffered']
    #allocation6 [shape = 's32[1]{0}', space=sflag, size = 0x4, scoped, tag = 'scoped memory for tpu_custom_call.1']
    #allocation7 [shape = 'u8[131072]{0}', space=vmem, size = 0x20000, scoped, tag = 'input window, operand 2, single buffered']
    #allocation8 [shape = 'u8[8192]{0}', space=vmem, size = 0x2000, scoped, tag = 'output window, operand 0, single buffered']
    %9 = vsyncpa [#allocation3], 0
    %10 = vsyncpa [#allocation6], 0
    %11 = vsyncpa [#allocation4], 0
    // Predicated region
    $region2: #{tpu_custom_call.1} parent=1 // pred_check
      _
    $region3: #{tpu_custom_call.1} parent=1 // pred_check_branch
      %13 = sbr.rel (0) target = $region5
    $region4: #{tpu_custom_call.1} parent=1 // pred_region
      %s15 = ssub.s32 128, 128
      %16 = vsyncadd [#allocation3], %s15
      %s18 = sshll.u32 [#allocation2], 4
      %s19 = int_to_ptr.vmem [resolvable:$true] %s18
      %21 = dma.hbm_to_vmem [thread:$0]  %s0, 128, %s19, [#allocation3]
    $region5: #{tpu_custom_call.1} parent=1 // pred_fallthru
      _
    // Predicated region
    $region6: #{tpu_custom_call.1} parent=1 // pred_check
      _
    $region7: #{tpu_custom_call.1} parent=1 // pred_check_branch
      %23 = sbr.rel (0) target = $region9
    $region8: #{tpu_custom_call.1} parent=1 // pred_region
      %s25 = ssub.s32 1024, 1024
      %26 = vsyncadd [#allocation6], %s25
      %s27 = sshll.u32 [#allocation5], 4
      %s28 = int_to_ptr.vmem [resolvable:$true] %s27
      %33 = dma.hbm_to_vmem [thread:$0]  %s1, 1024, %s28, [#allocation6], 128, 128, 8
    $region9: #{tpu_custom_call.1} parent=1 // pred_fallthru
      _
    // Predicated region
    $region10: #{tpu_custom_call.1} parent=1 // pred_check
      _
    $region11: #{tpu_custom_call.1} parent=1 // pred_check_branch
      %35 = sbr.rel (0) target = $region13
    $region12: #{tpu_custom_call.1} parent=1 // pred_region
      %s37 = ssub.s32 4096, 4096
      %38 = vsyncadd [#allocation6], %s37
      %s39 = sshll.u32 [#allocation7], 4
      %s40 = int_to_ptr.vmem [resolvable:$true] %s39
      %45 = dma.hbm_to_vmem [thread:$0]  %s2, 4096, %s40, [#allocation6], 128, 128, 8
    $region13: #{tpu_custom_call.1} parent=1 // pred_fallthru
      _
    // Predicated region
    $region14: #{tpu_custom_call.1} parent=1 // pred_check
      _
    $region15: #{tpu_custom_call.1} parent=1 // pred_check_branch
      %47 = sbr.rel (0) target = $region17
    $region16: #{tpu_custom_call.1} parent=1 // pred_region
      _
    $region17: #{tpu_custom_call.1} parent=1 // pred_fallthru
      _
    // Predicated region
    $region18: #{tpu_custom_call.1} parent=1 // pred_check
      _
    $region19: #{tpu_custom_call.1} parent=1 // pred_check_branch
      %49 = sbr.rel (0) target = $region21
    $region20: #{tpu_custom_call.1} parent=1 // pred_region
      %50 = dma.done [#allocation3], 128
    $region21: #{tpu_custom_call.1} parent=1 // pred_fallthru
      _
    // Predicated region
    $region22: #{tpu_custom_call.1} parent=1 // pred_check
      _
    $region23: #{tpu_custom_call.1} parent=1 // pred_check_branch
      %52 = sbr.rel (0) target = $region25
    $region24: #{tpu_custom_call.1} parent=1 // pred_region
      %53 = dma.done [#allocation6], 1024
    $region25: #{tpu_custom_call.1} parent=1 // pred_fallthru
      _
    // Predicated region
    $region26: #{tpu_custom_call.1} parent=1 // pred_check
      _
    $region27: #{tpu_custom_call.1} parent=1 // pred_check_branch
      %55 = sbr.rel (0) target = $region29
    $region28: #{tpu_custom_call.1} parent=1 // pred_region
      %56 = dma.done [#allocation6], 4096
    $region29: #{tpu_custom_call.1} parent=1 // pred_fallthru
      _
    %v58 = vld [vmem:[#allocation2] sm:$0xff]
    %v59 = vpack.c.bf16 %v58, %v58
    %v60 = vld [vmem:[#allocation5] sm:$0xff]
    %v61 = vld [vmem:[#allocation5 + $0x8] sm:$0xff]
    %v62 = vld [vmem:[#allocation5 + $0x10] sm:$0xff]
    %v63 = vld [vmem:[#allocation5 + $0x18] sm:$0xff]
    %v64 = vld [vmem:[#allocation5 + $0x20] sm:$0xff]
    %v65 = vld [vmem:[#allocation5 + $0x28] sm:$0xff]
    %v66 = vld [vmem:[#allocation5 + $0x30] sm:$0xff]
    %v67 = vld [vmem:[#allocation5 + $0x38] sm:$0xff]
    %v76 = vunpack.c.l.b16 %v60
    %v77 = vunpack.c.h.b16 %v60
    %v78 = vunpack.c.l.b16 %v61
    %v79 = vunpack.c.h.b16 %v61
    %v80 = vunpack.c.l.b16 %v62
    %v81 = vunpack.c.h.b16 %v62
    %v82 = vunpack.c.l.b16 %v63
    %v83 = vunpack.c.h.b16 %v63
    %v84 = vunpack.c.l.b16 %v64
    %v85 = vunpack.c.h.b16 %v64
    %v86 = vunpack.c.l.b16 %v65
    %v87 = vunpack.c.h.b16 %v65
    %v88 = vunpack.c.l.b16 %v66
    %v89 = vunpack.c.h.b16 %v66
    %v90 = vunpack.c.l.b16 %v67
    %v91 = vunpack.c.h.b16 %v67
    %v92 = vpack.c.b16 %v78, %v76
    %v93 = vpack.c.b16 %v79, %v77
    %v94 = vpack.c.b16 %v82, %v80
    %v95 = vpack.c.b16 %v83, %v81
    %v96 = vpack.c.b16 %v86, %v84
    %v97 = vpack.c.b16 %v87, %v85
    %v98 = vpack.c.b16 %v90, %v88
    %v99 = vpack.c.b16 %v91, %v89
    %vm108 = vcmask 523264
    %v110 = vsel %vm108, %v59, 0
    %112 = vmatprep.subr.bf16.mxu0 %v93
    %113 = vmatpush1.bf16.msra.mxu0 %v92
    %114 = vmatprep.subr.bf16.mxu0 %v95
    %115 = vmatpush1.bf16.msra.mxu0 %v94
    %116 = vmatprep.subr.bf16.mxu0 %v97
    %117 = vmatpush1.bf16.msra.mxu0 %v96
    %118 = vmatprep.subr.bf16.mxu0 %v99
    %119 = vmatpush1.bf16.msra.mxu0 %v98
    %120 = vmatprep.subr.bf16.mxu0 0
    %121 = vmatpush1.bf16.msra.mxu0 0
    %122 = vmatprep.subr.bf16.mxu0 0
    %123 = vmatpush1.bf16.msra.mxu0 0
    %124 = vmatprep.subr.bf16.mxu0 0
    %125 = vmatpush1.bf16.msra.mxu0 0
    %126 = vmatprep.subr.bf16.mxu0 0
    %127 = vmatpush1.bf16.msra.mxu0 0
    %128 = vmatprep.subr.bf16.mxu0 0
    %129 = vmatpush1.bf16.msra.mxu0 0
    %130 = vmatprep.subr.bf16.mxu0 0
    %131 = vmatpush1.bf16.msra.mxu0 0
    %132 = vmatprep.subr.bf16.mxu0 0
    %133 = vmatpush1.bf16.msra.mxu0 0
    %134 = vmatprep.subr.bf16.mxu0 0
    %135 = vmatpush1.bf16.msra.mxu0 0
    %136 = vmatprep.subr.bf16.mxu0 0
    %137 = vmatpush1.bf16.msra.mxu0 0
    %138 = vmatprep.subr.bf16.mxu0 0
    %139 = vmatpush1.bf16.msra.mxu0 0
    %140 = vmatprep.subr.bf16.mxu0 0
    %141 = vmatpush1.bf16.msra.mxu0 0
    %142 = vmatprep.subr.bf16.mxu0 0
    %143 = vmatpush1.bf16.msra.mxu0 0
    %144 = vmatprep.mubr.bf16.mxu0 0
    %145 = vmatmul.mubr.bf16.gmra.mrb[0].mxu0 %v110
    %v146 = vpop.f32.mrb[0].mxu0
    %v147 = vadd.f32 0.0, %v146
    %v148 = vpop.f32.mrb[0].mxu0
    %v149 = vadd.f32 0.0, %v148
    %v150 = vpop.f32.mrb[0].mxu0
    %v151 = vpop.f32.mrb[0].mxu0
    %152 = vdwg.mxu0
    %v153 = vpack.c.bf16 %v147, %v147
    %v154 = vpack.c.bf16 %v149, %v149
    %v155 = vld [vmem:[#allocation7] sm:$0xff]
    %v156 = vld [vmem:[#allocation7 + $0x8] sm:$0xff]
    %v157 = vld [vmem:[#allocation7 + $0x10] sm:$0xff]
    %v158 = vld [vmem:[#allocation7 + $0x18] sm:$0xff]
    %v159 = vld [vmem:[#allocation7 + $0x20] sm:$0xff]
    %v160 = vld [vmem:[#allocation7 + $0x28] sm:$0xff]
    %v161 = vld [vmem:[#allocation7 + $0x30] sm:$0xff]
    %v162 = vld [vmem:[#allocation7 + $0x38] sm:$0xff]
    %v163 = vld [vmem:[#allocation7 + $0x40] sm:$0xff]
    %v164 = vld [vmem:[#allocation7 + $0x48] sm:$0xff]
    %v165 = vld [vmem:[#allocation7 + $0x50] sm:$0xff]
    %v166 = vld [vmem:[#allocation7 + $0x58] sm:$0xff]
    %v167 = vld [vmem:[#allocation7 + $0x60] sm:$0xff]
    %v168 = vld [vmem:[#allocation7 + $0x68] sm:$0xff]
    %v169 = vld [vmem:[#allocation7 + $0x70] sm:$0xff]
    %v170 = vld [vmem:[#allocation7 + $0x78] sm:$0xff]
    %v171 = vld [vmem:[#allocation7 + $0x80] sm:$0xff]
    %v172 = vld [vmem:[#allocation7 + $0x88] sm:$0xff]
    %v173 = vld [vmem:[#allocation7 + $0x90] sm:$0xff]
    %v174 = vld [vmem:[#allocation7 + $0x98] sm:$0xff]
    %v175 = vld [vmem:[#allocation7 + $0xa0] sm:$0xff]
    %v176 = vld [vmem:[#allocation7 + $0xa8] sm:$0xff]
    %v177 = vld [vmem:[#allocation7 + $0xb0] sm:$0xff]
    %v178 = vld [vmem:[#allocation7 + $0xb8] sm:$0xff]
    %v179 = vld [vmem:[#allocation7 + $0xc0] sm:$0xff]
    %v180 = vld [vmem:[#allocation7 + $0xc8] sm:$0xff]
    %v181 = vld [vmem:[#allocation7 + $0xd0] sm:$0xff]
    %v182 = vld [vmem:[#allocation7 + $0xd8] sm:$0xff]
    %v183 = vld [vmem:[#allocation7 + $0xe0] sm:$0xff]
    %v184 = vld [vmem:[#allocation7 + $0xe8] sm:$0xff]
    %v185 = vld [vmem:[#allocation7 + $0xf0] sm:$0xff]
    %v186 = vld [vmem:[#allocation7 + $0xf8] sm:$0xff]
    %v187 = vld [vmem:[%s3] sm:$0x3]
    %v189 = vlaneseq
    %v190 = vshrl.u32 %v189, 7
    %v191 = vsub.s32 0, %v190
    %v192 = vrot.slane %v187, %v191
    %v193 = vlaneseq
    %v194 = vshrl.u32 %v193, 7
    %v195 = vsub.s32 1, %v194
    %v196 = vrot.slane %v187, %v195
    %v231 = vunpack.c.l.b16 %v155
    %v232 = vunpack.c.h.b16 %v155
    %v233 = vunpack.c.l.b16 %v156
    %v234 = vunpack.c.h.b16 %v156
    %v235 = vunpack.c.l.b16 %v157
    %v236 = vunpack.c.h.b16 %v157
    %v237 = vunpack.c.l.b16 %v158
    %v238 = vunpack.c.h.b16 %v158
    %v239 = vunpack.c.l.b16 %v159
    %v240 = vunpack.c.h.b16 %v159
    %v241 = vunpack.c.l.b16 %v160
    %v242 = vunpack.c.h.b16 %v160
    %v243 = vunpack.c.l.b16 %v161
    %v244 = vunpack.c.h.b16 %v161
    %v245 = vunpack.c.l.b16 %v162
    %v246 = vunpack.c.h.b16 %v162
    %v247 = vunpack.c.l.b16 %v163
    %v248 = vunpack.c.h.b16 %v163
    %v249 = vunpack.c.l.b16 %v164
    %v250 = vunpack.c.h.b16 %v164
    %v251 = vunpack.c.l.b16 %v165
    %v252 = vunpack.c.h.b16 %v165
    %v253 = vunpack.c.l.b16 %v166
    %v254 = vunpack.c.h.b16 %v166
    %v255 = vunpack.c.l.b16 %v167
    %v256 = vunpack.c.h.b16 %v167
    %v257 = vunpack.c.l.b16 %v168
    %v258 = vunpack.c.h.b16 %v168
    %v259 = vunpack.c.l.b16 %v169
    %v260 = vunpack.c.h.b16 %v169
    %v261 = vunpack.c.l.b16 %v170
    %v262 = vunpack.c.h.b16 %v170
    %v263 = vunpack.c.l.b16 %v171
    %v264 = vunpack.c.h.b16 %v171
    %v265 = vunpack.c.l.b16 %v172
    %v266 = vunpack.c.h.b16 %v172
    %v267 = vunpack.c.l.b16 %v173
    %v268 = vunpack.c.h.b16 %v173
    %v269 = vunpack.c.l.b16 %v174
    %v270 = vunpack.c.h.b16 %v174
    %v271 = vunpack.c.l.b16 %v175
    %v272 = vunpack.c.h.b16 %v175
    %v273 = vunpack.c.l.b16 %v176
    %v274 = vunpack.c.h.b16 %v176
    %v275 = vunpack.c.l.b16 %v177
    %v276 = vunpack.c.h.b16 %v177
    %v277 = vunpack.c.l.b16 %v178
    %v278 = vunpack.c.h.b16 %v178
    %v279 = vunpack.c.l.b16 %v179
    %v280 = vunpack.c.h.b16 %v179
    %v281 = vunpack.c.l.b16 %v180
    %v282 = vunpack.c.h.b16 %v180
    %v283 = vunpack.c.l.b16 %v181
    %v284 = vunpack.c.h.b16 %v181
    %v285 = vunpack.c.l.b16 %v182
    %v286 = vunpack.c.h.b16 %v182
    %v287 = vunpack.c.l.b16 %v183
    %v288 = vunpack.c.h.b16 %v183
    %v289 = vunpack.c.l.b16 %v184
    %v290 = vunpack.c.h.b16 %v184
    %v291 = vunpack.c.l.b16 %v185
    %v292 = vunpack.c.h.b16 %v185
    %v293 = vunpack.c.l.b16 %v186
    %v294 = vunpack.c.h.b16 %v186
    %v295 = vpack.c.b16 %v233, %v231
    %v296 = vpack.c.b16 %v234, %v232
    %v297 = vpack.c.b16 %v237, %v235
    %v298 = vpack.c.b16 %v238, %v236
    %v299 = vpack.c.b16 %v241, %v239
    %v300 = vpack.c.b16 %v242, %v240
    %v301 = vpack.c.b16 %v245, %v243
    %v302 = vpack.c.b16 %v246, %v244
    %v303 = vpack.c.b16 %v249, %v247
    %v304 = vpack.c.b16 %v250, %v248
    %v305 = vpack.c.b16 %v253, %v251
    %v306 = vpack.c.b16 %v254, %v252
    %v307 = vpack.c.b16 %v257, %v255
    %v308 = vpack.c.b16 %v258, %v256
    %v309 = vpack.c.b16 %v261, %v259
    %v310 = vpack.c.b16 %v262, %v260
    %v311 = vpack.c.b16 %v265, %v263
    %v312 = vpack.c.b16 %v266, %v264
    %v313 = vpack.c.b16 %v269, %v267
    %v314 = vpack.c.b16 %v270, %v268
    %v315 = vpack.c.b16 %v273, %v271
    %v316 = vpack.c.b16 %v274, %v272
    %v317 = vpack.c.b16 %v277, %v275
    %v318 = vpack.c.b16 %v278, %v276
    %v319 = vpack.c.b16 %v281, %v279
    %v320 = vpack.c.b16 %v282, %v280
    %v321 = vpack.c.b16 %v285, %v283
    %v322 = vpack.c.b16 %v286, %v284
    %v323 = vpack.c.b16 %v289, %v287
    %v324 = vpack.c.b16 %v290, %v288
    %v325 = vpack.c.b16 %v293, %v291
    %v326 = vpack.c.b16 %v294, %v292
    %359 = vmatprep.subr.bf16.mxu0 %v296
    %360 = vmatpush1.bf16.msra.mxu0 %v295
    %361 = vmatprep.subr.bf16.mxu0 %v298
    %362 = vmatpush1.bf16.msra.mxu0 %v297
    %363 = vmatprep.subr.bf16.mxu0 %v300
    %364 = vmatpush1.bf16.msra.mxu0 %v299
    %365 = vmatprep.subr.bf16.mxu0 %v302
    %366 = vmatpush1.bf16.msra.mxu0 %v301
    %367 = vmatprep.subr.bf16.mxu0 %v304
    %368 = vmatpush1.bf16.msra.mxu0 %v303
    %369 = vmatprep.subr.bf16.mxu0 %v306
    %370 = vmatpush1.bf16.msra.mxu0 %v305
    %371 = vmatprep.subr.bf16.mxu0 %v308
    %372 = vmatpush1.bf16.msra.mxu0 %v307
    %373 = vmatprep.subr.bf16.mxu0 %v310
    %374 = vmatpush1.bf16.msra.mxu0 %v309
    %375 = vmatprep.subr.bf16.mxu0 %v312
    %376 = vmatpush1.bf16.msra.mxu0 %v311
    %377 = vmatprep.subr.bf16.mxu0 %v314
    %378 = vmatpush1.bf16.msra.mxu0 %v313
    %379 = vmatprep.subr.bf16.mxu0 %v316
    %380 = vmatpush1.bf16.msra.mxu0 %v315
    %381 = vmatprep.subr.bf16.mxu0 %v318
    %382 = vmatpush1.bf16.msra.mxu0 %v317
    %383 = vmatprep.subr.bf16.mxu0 %v320
    %384 = vmatpush1.bf16.msra.mxu0 %v319
    %385 = vmatprep.subr.bf16.mxu0 %v322
    %386 = vmatpush1.bf16.msra.mxu0 %v321
    %387 = vmatprep.subr.bf16.mxu0 %v324
    %388 = vmatpush1.bf16.msra.mxu0 %v323
    %389 = vmatprep.subr.bf16.mxu0 %v326
    %390 = vmatpush1.bf16.msra.mxu0 %v325
    %391 = vmatprep.mubr.bf16.mxu0 %v154
    %392 = vmatmul.mubr.bf16.gmra.mrb[0].mxu0 %v153
    %v393 = vpop.f32.mrb[0].mxu0
    %v394 = vadd.f32 %v192, %v393
    %v395 = vpop.f32.mrb[0].mxu0
    %v396 = vadd.f32 %v196, %v395
    %v397 = vpop.f32.mrb[0].mxu0
    %v398 = vpop.f32.mrb[0].mxu0
    %399 = vdwg.mxu0
    %400 = vst [vmem:[#allocation8] sm:$0xff] %v394
    %401 = vst [vmem:[#allocation8 + $0x8] sm:$0xff] %v396
    // Predicated region
    $region30: #{tpu_custom_call.1} parent=1 // pred_check
      _
    $region31: #{tpu_custom_call.1} parent=1 // pred_check_branch
      %403 = sbr.rel (0) target = $region33
    $region32: #{tpu_custom_call.1} parent=1 // pred_region
      %s405 = ssub.s32 256, 256
      %406 = vsyncadd [#allocation4], %s405
      %s408 = sshll.u32 [#allocation8], 4
      %s409 = int_to_ptr.vmem [resolvable:$true] %s408
      %411 = dma.vmem_to_hbm [thread:$0]  %s409, 256, %s4, [#allocation4]
    $region33: #{tpu_custom_call.1} parent=1 // pred_fallthru
      _
    // Predicated region
    $region34: #{tpu_custom_call.1} parent=1 // pred_check
      _
    $region35: #{tpu_custom_call.1} parent=1 // pred_check_branch
      %413 = sbr.rel (0) target = $region37
    $region36: #{tpu_custom_call.1} parent=1 // pred_region
      %414 = dma.done [#allocation4], 256
    $region37: #{tpu_custom_call.1} parent=1 // pred_fallthru
      _
    %415 = vsyncpa [#allocation3], 1
    %416 = vsyncpa [#allocation6], 1
    %417 = vsyncpa [#allocation4], 1

// kernel: tpu_custom_call.1
$region0: #{tpu_custom_call.1}
  #allocation0 [shape = 'u32[]', space=smem, size = 0x4, offset = 0x4, fixed_abs, tag = 'smem constant byte address 0x4 - core index']
  #allocation1 [shape = 'u32[144,128]{1,0:T(1,128)}', space=vmem, size = 0x12000, scoped, tag = 'internal scratch']
  %s0 = inlined_call_operand.hbm [shape: f32[8,64], index: 0, kind: input, shape index: {}]
  %s1 = inlined_call_operand.hbm [shape: bf16[64,256], index: 1, kind: input, shape index: {}]
  %s2 = inlined_call_operand.hbm [shape: bf16[256,256], index: 2, kind: input, shape index: {}]
  %s3 = inlined_call_operand.vmem [shape: f32[1,256], index: 3, kind: input, shape index: {}]
  %s4 = inlined_call_operand.hbm [shape: f32[8,256], index: 4, kind: output, shape index: {}]
  %s5 = sld [smem:[#allocation0]]
  $region38: #{tpu_custom_call.1} parent=0
    _
  %s7 = ssub.s32 1, %s5
  %s8 = scalar_select 0, %s7, %s5
  $region1: #{tpu_custom_call.1} parent=0
    #allocation2 [shape = 'u8[4096]{0}', space=vmem, size = 0x1000, scoped, tag = 'input window, operand 0, single buffered']
    #allocation3 [shape = 's32[1]{0}', space=sflag, size = 0x4, scoped, tag = 'scoped memory for tpu_custom_call.1']
    #allocation4 [shape = 's32[1]{0}', space=sflag, size = 0x4, scoped, tag = 'scoped memory for tpu_custom_call.1']
    #allocation5 [shape = 'u8[32768]{0}', space=vmem, size = 0x8000, scoped, tag = 'input window, operand 1, single buffered']
    #allocation6 [shape = 's32[1]{0}', space=sflag, size = 0x4, scoped, tag = 'scoped memory for tpu_custom_call.1']
    #allocation7 [shape = 'u8[131072]{0}', space=vmem, size = 0x20000, scoped, tag = 'input window, operand 2, single buffered']
    #allocation8 [shape = 'u8[8192]{0}', space=vmem, size = 0x2000, scoped, tag = 'output window, operand 0, single buffered']
    %9 = vsyncpa [#allocation3], 0
    %10 = vsyncpa [#allocation6], 0
    %11 = vsyncpa [#allocation4], 0
    // Predicated region
    $region2: #{tpu_custom_call.1} parent=1 // pred_check
      _
    $region3: #{tpu_custom_call.1} parent=1 // pred_check_branch
      %13 = sbr.rel (0) target = $region5
    $region4: #{tpu_custom_call.1} parent=1 // pred_region
      %s15 = ssub.s32 128, 128
      %16 = vsyncadd [#allocation3], %s15
      %s18 = sshll.u32 [#allocation2], 4
      %s19 = int_to_ptr.vmem [resolvable:$true] %s18
      %21 = dma.hbm_to_vmem [thread:$0]  %s0, 128, %s19, [#allocation3]
    $region5: #{tpu_custom_call.1} parent=1 // pred_fallthru
      _
    // Predicated region
    $region6: #{tpu_custom_call.1} parent=1 // pred_check
      _
    $region7: #{tpu_custom_call.1} parent=1 // pred_check_branch
      %23 = sbr.rel (0) target = $region9
    $region8: #{tpu_custom_call.1} parent=1 // pred_region
      %s25 = ssub.s32 1024, 1024
      %26 = vsyncadd [#allocation6], %s25
      %s27 = sshll.u32 [#allocation5], 4
      %s28 = int_to_ptr.vmem [resolvable:$true] %s27
      %33 = dma.hbm_to_vmem [thread:$0]  %s1, 1024, %s28, [#allocation6], 128, 128, 8
    $region9: #{tpu_custom_call.1} parent=1 // pred_fallthru
      _
    // Predicated region
    $region10: #{tpu_custom_call.1} parent=1 // pred_check
      _
    $region11: #{tpu_custom_call.1} parent=1 // pred_check_branch
      %35 = sbr.rel (0) target = $region13
    $region12: #{tpu_custom_call.1} parent=1 // pred_region
      %s37 = ssub.s32 4096, 4096
      %38 = vsyncadd [#allocation6], %s37
      %s39 = sshll.u32 [#allocation7], 4
      %s40 = int_to_ptr.vmem [resolvable:$true] %s39
      %45 = dma.hbm_to_vmem [thread:$0]  %s2, 4096, %s40, [#allocation6], 128, 128, 8
    $region13: #{tpu_custom_call.1} parent=1 // pred_fallthru
      _
    // Predicated region
    $region14: #{tpu_custom_call.1} parent=1 // pred_check
      _
    $region15: #{tpu_custom_call.1} parent=1 // pred_check_branch
      %47 = sbr.rel (0) target = $region17
    $region16: #{tpu_custom_call.1} parent=1 // pred_region
      _
    $region17: #{tpu_custom_call.1} parent=1 // pred_fallthru
      _
    // Predicated region
    $region18: #{tpu_custom_call.1} parent=1 // pred_check
      _
    $region19: #{tpu_custom_call.1} parent=1 // pred_check_branch
      %49 = sbr.rel (0) target = $region21
    $region20: #{tpu_custom_call.1} parent=1 // pred_region
      %50 = dma.done [#allocation3], 128
    $region21: #{tpu_custom_call.1} parent=1 // pred_fallthru
      _
    // Predicated region
    $region22: #{tpu_custom_call.1} parent=1 // pred_check
      _
    $region23: #{tpu_custom_call.1} parent=1 // pred_check_branch
      %52 = sbr.rel (0) target = $region25
    $region24: #{tpu_custom_call.1} parent=1 // pred_region
      %53 = dma.done [#allocation6], 1024
    $region25: #{tpu_custom_call.1} parent=1 // pred_fallthru
      _
    // Predicated region
    $region26: #{tpu_custom_call.1} parent=1 // pred_check
      _
    $region27: #{tpu_custom_call.1} parent=1 // pred_check_branch
      %55 = sbr.rel (0) target = $region29
    $region28: #{tpu_custom_call.1} parent=1 // pred_region
      %56 = dma.done [#allocation6], 4096
    $region29: #{tpu_custom_call.1} parent=1 // pred_fallthru
      _
    %v58 = vld [vmem:[#allocation2] sm:$0xff]
    %v59 = vpack.c.bf16 %v58, %v58
    %v60 = vld [vmem:[#allocation5] sm:$0xff]
    %v61 = vld [vmem:[#allocation5 + $0x8] sm:$0xff]
    %v62 = vld [vmem:[#allocation5 + $0x10] sm:$0xff]
    %v63 = vld [vmem:[#allocation5 + $0x18] sm:$0xff]
    %v64 = vld [vmem:[#allocation5 + $0x20] sm:$0xff]
    %v65 = vld [vmem:[#allocation5 + $0x28] sm:$0xff]
    %v66 = vld [vmem:[#allocation5 + $0x30] sm:$0xff]
    %v67 = vld [vmem:[#allocation5 + $0x38] sm:$0xff]
    %v76 = vunpack.c.l.b16 %v60
    %v77 = vunpack.c.h.b16 %v60
    %v78 = vunpack.c.l.b16 %v61
    %v79 = vunpack.c.h.b16 %v61
    %v80 = vunpack.c.l.b16 %v62
    %v81 = vunpack.c.h.b16 %v62
    %v82 = vunpack.c.l.b16 %v63
    %v83 = vunpack.c.h.b16 %v63
    %v84 = vunpack.c.l.b16 %v64
    %v85 = vunpack.c.h.b16 %v64
    %v86 = vunpack.c.l.b16 %v65
    %v87 = vunpack.c.h.b16 %v65
    %v88 = vunpack.c.l.b16 %v66
    %v89 = vunpack.c.h.b16 %v66
    %v90 = vunpack.c.l.b16 %v67
    %v91 = vunpack.c.h.b16 %v67
    %v92 = vpack.c.b16 %v78, %v76
    %v93 = vpack.c.b16 %v79, %v77
    %v94 = vpack.c.b16 %v82, %v80
    %v95 = vpack.c.b16 %v83, %v81
    %v96 = vpack.c.b16 %v86, %v84
    %v97 = vpack.c.b16 %v87, %v85
    %v98 = vpack.c.b16 %v90, %v88
    %v99 = vpack.c.b16 %v91, %v89
    %vm108 = vcmask 523264
    %v110 = vsel %vm108, %v59, 0
    %112 = vmatprep.subr.bf16.mxu0 %v93
    %113 = vmatpush1.bf16.msra.mxu0 %v92
    %114 = vmatprep.subr.bf16.mxu0 %v95
    %115 = vmatpush1.bf16.msra.mxu0 %v94
    %116 = vmatprep.subr.bf16.mxu0 %v97
    %117 = vmatpush1.bf16.msra.mxu0 %v96
    %118 = vmatprep.subr.bf16.mxu0 %v99
    %119 = vmatpush1.bf16.msra.mxu0 %v98
    %120 = vmatprep.subr.bf16.mxu0 0
    %121 = vmatpush1.bf16.msra.mxu0 0
    %122 = vmatprep.subr.bf16.mxu0 0
    %123 = vmatpush1.bf16.msra.mxu0 0
    %124 = vmatprep.subr.bf16.mxu0 0
    %125 = vmatpush1.bf16.msra.mxu0 0
    %126 = vmatprep.subr.bf16.mxu0 0
    %127 = vmatpush1.bf16.msra.mxu0 0
    %128 = vmatprep.subr.bf16.mxu0 0
    %129 = vmatpush1.bf16.msra.mxu0 0
    %130 = vmatprep.subr.bf16.mxu0 0
    %131 = vmatpush1.bf16.msra.mxu0 0
    %132 = vmatprep.subr.bf16.mxu0 0
    %133 = vmatpush1.bf16.msra.mxu0 0
    %134 = vmatprep.subr.bf16.mxu0 0
    %135 = vmatpush1.bf16.msra.mxu0 0
    %136 = vmatprep.subr.bf16.mxu0 0
    %137 = vmatpush1.bf16.msra.mxu0 0
    %138 = vmatprep.subr.bf16.mxu0 0
    %139 = vmatpush1.bf16.msra.mxu0 0
    %140 = vmatprep.subr.bf16.mxu0 0
    %141 = vmatpush1.bf16.msra.mxu0 0
    %142 = vmatprep.subr.bf16.mxu0 0
    %143 = vmatpush1.bf16.msra.mxu0 0
    %144 = vmatprep.mubr.bf16.mxu0 0
    %145 = vmatmul.mubr.bf16.gmra.mrb[0].mxu0 %v110
    %v146 = vpop.f32.mrb[0].mxu0
    %v147 = vadd.f32 0.0, %v146
    %v148 = vpop.f32.mrb[0].mxu0
    %v149 = vadd.f32 0.0, %v148
    %v150 = vpop.f32.mrb[0].mxu0
    %v151 = vpop.f32.mrb[0].mxu0
    %152 = vdwg.mxu0
    %v153 = vpack.c.bf16 %v147, %v147
    %v154 = vpack.c.bf16 %v149, %v149
    %v155 = vld [vmem:[#allocation7] sm:$0xff]
    %v156 = vld [vmem:[#allocation7 + $0x8] sm:$0xff]
    %v157 = vld [vmem:[#allocation7 + $0x10] sm:$0xff]
    %v158 = vld [vmem:[#allocation7 + $0x18] sm:$0xff]
    %v159 = vld [vmem:[#allocation7 + $0x20] sm:$0xff]
    %v160 = vld [vmem:[#allocation7 + $0x28] sm:$0xff]
    %v161 = vld [vmem:[#allocation7 + $0x30] sm:$0xff]
    %v162 = vld [vmem:[#allocation7 + $0x38] sm:$0xff]
    %v163 = vld [vmem:[#allocation7 + $0x40] sm:$0xff]
    %v164 = vld [vmem:[#allocation7 + $0x48] sm:$0xff]
    %v165 = vld [vmem:[#allocation7 + $0x50] sm:$0xff]
    %v166 = vld [vmem:[#allocation7 + $0x58] sm:$0xff]
    %v167 = vld [vmem:[#allocation7 + $0x60] sm:$0xff]
    %v168 = vld [vmem:[#allocation7 + $0x68] sm:$0xff]
    %v169 = vld [vmem:[#allocation7 + $0x70] sm:$0xff]
    %v170 = vld [vmem:[#allocation7 + $0x78] sm:$0xff]
    %v171 = vld [vmem:[#allocation7 + $0x80] sm:$0xff]
    %v172 = vld [vmem:[#allocation7 + $0x88] sm:$0xff]
    %v173 = vld [vmem:[#allocation7 + $0x90] sm:$0xff]
    %v174 = vld [vmem:[#allocation7 + $0x98] sm:$0xff]
    %v175 = vld [vmem:[#allocation7 + $0xa0] sm:$0xff]
    %v176 = vld [vmem:[#allocation7 + $0xa8] sm:$0xff]
    %v177 = vld [vmem:[#allocation7 + $0xb0] sm:$0xff]
    %v178 = vld [vmem:[#allocation7 + $0xb8] sm:$0xff]
    %v179 = vld [vmem:[#allocation7 + $0xc0] sm:$0xff]
    %v180 = vld [vmem:[#allocation7 + $0xc8] sm:$0xff]
    %v181 = vld [vmem:[#allocation7 + $0xd0] sm:$0xff]
    %v182 = vld [vmem:[#allocation7 + $0xd8] sm:$0xff]
    %v183 = vld [vmem:[#allocation7 + $0xe0] sm:$0xff]
    %v184 = vld [vmem:[#allocation7 + $0xe8] sm:$0xff]
    %v185 = vld [vmem:[#allocation7 + $0xf0] sm:$0xff]
    %v186 = vld [vmem:[#allocation7 + $0xf8] sm:$0xff]
    %v187 = vld [vmem:[%s3] sm:$0x3]
    %v189 = vlaneseq
    %v190 = vshrl.u32 %v189, 7
    %v191 = vsub.s32 0, %v190
    %v192 = vrot.slane %v187, %v191
    %v193 = vlaneseq
    %v194 = vshrl.u32 %v193, 7
    %v195 = vsub.s32 1, %v194
    %v196 = vrot.slane %v187, %v195
    %v231 = vunpack.c.l.b16 %v155
    %v232 = vunpack.c.h.b16 %v155
    %v233 = vunpack.c.l.b16 %v156
    %v234 = vunpack.c.h.b16 %v156
    %v235 = vunpack.c.l.b16 %v157
    %v236 = vunpack.c.h.b16 %v157
    %v237 = vunpack.c.l.b16 %v158
    %v238 = vunpack.c.h.b16 %v158
    %v239 = vunpack.c.l.b16 %v159
    %v240 = vunpack.c.h.b16 %v159
    %v241 = vunpack.c.l.b16 %v160
    %v242 = vunpack.c.h.b16 %v160
    %v243 = vunpack.c.l.b16 %v161
    %v244 = vunpack.c.h.b16 %v161
    %v245 = vunpack.c.l.b16 %v162
    %v246 = vunpack.c.h.b16 %v162
    %v247 = vunpack.c.l.b16 %v163
    %v248 = vunpack.c.h.b16 %v163
    %v249 = vunpack.c.l.b16 %v164
    %v250 = vunpack.c.h.b16 %v164
    %v251 = vunpack.c.l.b16 %v165
    %v252 = vunpack.c.h.b16 %v165
    %v253 = vunpack.c.l.b16 %v166
    %v254 = vunpack.c.h.b16 %v166
    %v255 = vunpack.c.l.b16 %v167
    %v256 = vunpack.c.h.b16 %v167
    %v257 = vunpack.c.l.b16 %v168
    %v258 = vunpack.c.h.b16 %v168
    %v259 = vunpack.c.l.b16 %v169
    %v260 = vunpack.c.h.b16 %v169
    %v261 = vunpack.c.l.b16 %v170
    %v262 = vunpack.c.h.b16 %v170
    %v263 = vunpack.c.l.b16 %v171
    %v264 = vunpack.c.h.b16 %v171
    %v265 = vunpack.c.l.b16 %v172
    %v266 = vunpack.c.h.b16 %v172
    %v267 = vunpack.c.l.b16 %v173
    %v268 = vunpack.c.h.b16 %v173
    %v269 = vunpack.c.l.b16 %v174
    %v270 = vunpack.c.h.b16 %v174
    %v271 = vunpack.c.l.b16 %v175
    %v272 = vunpack.c.h.b16 %v175
    %v273 = vunpack.c.l.b16 %v176
    %v274 = vunpack.c.h.b16 %v176
    %v275 = vunpack.c.l.b16 %v177
    %v276 = vunpack.c.h.b16 %v177
    %v277 = vunpack.c.l.b16 %v178
    %v278 = vunpack.c.h.b16 %v178
    %v279 = vunpack.c.l.b16 %v179
    %v280 = vunpack.c.h.b16 %v179
    %v281 = vunpack.c.l.b16 %v180
    %v282 = vunpack.c.h.b16 %v180
    %v283 = vunpack.c.l.b16 %v181
    %v284 = vunpack.c.h.b16 %v181
    %v285 = vunpack.c.l.b16 %v182
    %v286 = vunpack.c.h.b16 %v182
    %v287 = vunpack.c.l.b16 %v183
    %v288 = vunpack.c.h.b16 %v183
    %v289 = vunpack.c.l.b16 %v184
    %v290 = vunpack.c.h.b16 %v184
    %v291 = vunpack.c.l.b16 %v185
    %v292 = vunpack.c.h.b16 %v185
    %v293 = vunpack.c.l.b16 %v186
    %v294 = vunpack.c.h.b16 %v186
    %v295 = vpack.c.b16 %v233, %v231
    %v296 = vpack.c.b16 %v234, %v232
    %v297 = vpack.c.b16 %v237, %v235
    %v298 = vpack.c.b16 %v238, %v236
    %v299 = vpack.c.b16 %v241, %v239
    %v300 = vpack.c.b16 %v242, %v240
    %v301 = vpack.c.b16 %v245, %v243
    %v302 = vpack.c.b16 %v246, %v244
    %v303 = vpack.c.b16 %v249, %v247
    %v304 = vpack.c.b16 %v250, %v248
    %v305 = vpack.c.b16 %v253, %v251
    %v306 = vpack.c.b16 %v254, %v252
    %v307 = vpack.c.b16 %v257, %v255
    %v308 = vpack.c.b16 %v258, %v256
    %v309 = vpack.c.b16 %v261, %v259
    %v310 = vpack.c.b16 %v262, %v260
    %v311 = vpack.c.b16 %v265, %v263
    %v312 = vpack.c.b16 %v266, %v264
    %v313 = vpack.c.b16 %v269, %v267
    %v314 = vpack.c.b16 %v270, %v268
    %v315 = vpack.c.b16 %v273, %v271
    %v316 = vpack.c.b16 %v274, %v272
    %v317 = vpack.c.b16 %v277, %v275
    %v318 = vpack.c.b16 %v278, %v276
    %v319 = vpack.c.b16 %v281, %v279
    %v320 = vpack.c.b16 %v282, %v280
    %v321 = vpack.c.b16 %v285, %v283
    %v322 = vpack.c.b16 %v286, %v284
    %v323 = vpack.c.b16 %v289, %v287
    %v324 = vpack.c.b16 %v290, %v288
    %v325 = vpack.c.b16 %v293, %v291
    %v326 = vpack.c.b16 %v294, %v292
    %359 = vmatprep.subr.bf16.mxu0 %v296
    %360 = vmatpush1.bf16.msra.mxu0 %v295
    %361 = vmatprep.subr.bf16.mxu0 %v298
    %362 = vmatpush1.bf16.msra.mxu0 %v297
    %363 = vmatprep.subr.bf16.mxu0 %v300
    %364 = vmatpush1.bf16.msra.mxu0 %v299
    %365 = vmatprep.subr.bf16.mxu0 %v302
    %366 = vmatpush1.bf16.msra.mxu0 %v301
    %367 = vmatprep.subr.bf16.mxu0 %v304
    %368 = vmatpush1.bf16.msra.mxu0 %v303
    %369 = vmatprep.subr.bf16.mxu0 %v306
    %370 = vmatpush1.bf16.msra.mxu0 %v305
    %371 = vmatprep.subr.bf16.mxu0 %v308
    %372 = vmatpush1.bf16.msra.mxu0 %v307
    %373 = vmatprep.subr.bf16.mxu0 %v310
    %374 = vmatpush1.bf16.msra.mxu0 %v309
    %375 = vmatprep.subr.bf16.mxu0 %v312
    %376 = vmatpush1.bf16.msra.mxu0 %v311
    %377 = vmatprep.subr.bf16.mxu0 %v314
    %378 = vmatpush1.bf16.msra.mxu0 %v313
    %379 = vmatprep.subr.bf16.mxu0 %v316
    %380 = vmatpush1.bf16.msra.mxu0 %v315
    %381 = vmatprep.subr.bf16.mxu0 %v318
    %382 = vmatpush1.bf16.msra.mxu0 %v317
    %383 = vmatprep.subr.bf16.mxu0 %v320
    %384 = vmatpush1.bf16.msra.mxu0 %v319
    %385 = vmatprep.subr.bf16.mxu0 %v322
    %386 = vmatpush1.bf16.msra.mxu0 %v321
    %387 = vmatprep.subr.bf16.mxu0 %v324
    %388 = vmatpush1.bf16.msra.mxu0 %v323
    %389 = vmatprep.subr.bf16.mxu0 %v326
    %390 = vmatpush1.bf16.msra.mxu0 %v325
    %391 = vmatprep.mubr.bf16.mxu0 %v154
    %392 = vmatmul.mubr.bf16.gmra.mrb[0].mxu0 %v153
    %v393 = vpop.f32.mrb[0].mxu0
    %v394 = vadd.f32 %v192, %v393
    %v395 = vpop.f32.mrb[0].mxu0
    %v396 = vadd.f32 %v196, %v395
    %v397 = vpop.f32.mrb[0].mxu0
    %v398 = vpop.f32.mrb[0].mxu0
    %399 = vdwg.mxu0
    %400 = vst [vmem:[#allocation8] sm:$0xff] %v394
    %401 = vst [vmem:[#allocation8 + $0x8] sm:$0xff] %v396
    // Predicated region
    $region30: #{tpu_custom_call.1} parent=1 // pred_check
      _
    $region31: #{tpu_custom_call.1} parent=1 // pred_check_branch
      %403 = sbr.rel (0) target = $region33
    $region32: #{tpu_custom_call.1} parent=1 // pred_region
      %s405 = ssub.s32 256, 256
      %406 = vsyncadd [#allocation4], %s405
      %s408 = sshll.u32 [#allocation8], 4
      %s409 = int_to_ptr.vmem [resolvable:$true] %s408
      %411 = dma.vmem_to_hbm [thread:$0]  %s409, 256, %s4, [#allocation4]
    $region33: #{tpu_custom_call.1} parent=1 // pred_fallthru
      _
    // Predicated region
    $region34: #{tpu_custom_call.1} parent=1 // pred_check
      _
    $region35: #{tpu_custom_call.1} parent=1 // pred_check_branch
      %413 = sbr.rel (0) target = $region37
    $region36: #{tpu_custom_call.1} parent=1 // pred_region
      %414 = dma.done [#allocation4], 256
    $region37: #{tpu_custom_call.1} parent=1 // pred_fallthru
      _
    %415 = vsyncpa [#allocation3], 1
    %416 = vsyncpa [#allocation6], 1
    %417 = vsyncpa [#allocation4], 1

</llo_original>
